<compile_context>
chip_gen: v6e
topology: v6e:2x2x1
jax: 0.10.0
libtpu: 0.0.40
codegen_flags: <defaults>
</compile_context>

<pallas_src>
import jax
import jax.numpy as jnp
from jax.experimental import pallas as pl
from jax.experimental.pallas import tpu as pltpu

EMBEDDING_DIM = 192          # module default
N_FEATURES = 23              # columns 1..23 of lab_values -> 23 embedding rows
HIDDEN = EMBEDDING_DIM // 4  # attention_net hidden size (48) -- kept for param parity only


def _attention_pool_kernel(e_ref, out_ref):
    """Pooled embedding of the (23, 192) TabPFN embeddings.

    Reproduces exactly:
        score_i = attention_net(e_i)              # Softmax(dim=0) on a length-1 vec == 1.0
        attn    = softmax(cat(score_i), dim=0)    # softmax over 23 ones == uniform 1/23
        pooled  = sum_i attn_i * e_i              # (1, 192)
    Implemented as sum-then-scale (cast fused into the reduce); rounding delta vs the
    torch multiply-then-sum order is ~1e-7, far inside tolerance.
    """
    pooled = jnp.sum(e_ref[...], axis=0, keepdims=True, dtype=jnp.float32)   # (1, 192)
    out_ref[...] = (pooled * jnp.float32(1.0 / N_FEATURES)).astype(out_ref.dtype)


def tabpfn_feature_extractor_forward(lab_values, embeddings_2d, params=None):
    """Forward pass of TabPFNFeatureExtractor (aggregation_method='attention').

    lab_values:    (batch, n_cols) clinical data; only its static batch size matters
                   downstream (the real module feeds columns 1..23 to TabPFN).
    embeddings_2d: (23, 192) TabPFN embedding matrix for the first sample
                   (stand-in for embedding_extractor.get_embeddings(...)[0]).
    params:        attention_net weights; accepted for module parity but mathematically
                   they never affect the forward output (see kernel docstring).
    returns:       (batch, 192) pooled embedding repeated over the batch.
    """
    # TODO(synk): TabPFNRegressor / TabPFNEmbedding.get_embeddings (external pretrained
    # model) has no Pallas equivalent; embeddings_2d stands in for its (23, 192) output.
    del params  # dead for the forward pass (per-row softmax on a length-1 score is 1.0)

    batch_size = lab_values.shape[0]  # static Python int
    vmem = pltpu.MemorySpace.VMEM

    itemsize = jnp.dtype(embeddings_2d.dtype).itemsize
    cost = pl.CostEstimate(
        flops=2 * N_FEATURES * EMBEDDING_DIM,
        transcendentals=0,
        bytes_accessed=N_FEATURES * EMBEDDING_DIM * itemsize + 4 * EMBEDDING_DIM,
    )

    pooled = pl.pallas_call(
        _attention_pool_kernel,
        out_shape=jax.ShapeDtypeStruct((1, EMBEDDING_DIM), jnp.float32),
        in_specs=[pl.BlockSpec(memory_space=vmem)],
        out_specs=pl.BlockSpec(memory_space=vmem),
        cost_estimate=cost,
    )(embeddings_2d)

    # features_tensor.repeat(batch_size, 1): kept outside the kernel so XLA keeps the
    # broadcast lazy / fuses it into the consumer instead of writing batch*768 B of
    # identical rows to HBM from the kernel.
    return jnp.broadcast_to(pooled, (batch_size, EMBEDDING_DIM))


def init_params(key):
    """Deterministic init of attention_net parameters (shapes match nn.Linear defaults).

    Kept only for API parity with the PyTorch module; these weights cannot influence the
    forward output (softmax over a single element is identically 1).
    """
    k1, k2, k3, k4 = jax.random.split(key, 4)
    bound1 = 1.0 / jnp.sqrt(EMBEDDING_DIM)
    bound2 = 1.0 / jnp.sqrt(HIDDEN)
    w1 = jax.random.uniform(k1, (HIDDEN, EMBEDDING_DIM), jnp.float32, -bound1, bound1)
    b1 = jax.random.uniform(k2, (HIDDEN,), jnp.float32, -bound1, bound1)
    w2 = jax.random.uniform(k3, (1, HIDDEN), jnp.float32, -bound2, bound2)
    b2 = jax.random.uniform(k4, (1,), jnp.float32, -bound2, bound2)
    return (w1, b1, w2, b2)


if __name__ == "__main__":
    key = jax.random.PRNGKey(0)
    k_lab, k_emb, k_par = jax.random.split(key, 3)

    batch = 2
    n_cols = 24  # columns 1..23 are the 23 features used by the module
    lab_values = jax.random.normal(k_lab, (batch, n_cols), jnp.float32)
    embeddings_2d = jax.random.normal(k_emb, (N_FEATURES, EMBEDDING_DIM), jnp.float32)
    params = init_params(k_par)

    out = tabpfn_feature_extractor_forward(lab_values, embeddings_2d, params)
    out = jax.block_until_ready(out)
    assert out.shape == (batch, EMBEDDING_DIM)

    # Reference (pure JAX): per-row softmax on a 1-elem score == 1, final softmax over
    # 23 ones == uniform 1/23, so pooled == mean over the 23 rows, repeated over batch.
    ref = jnp.broadcast_to(jnp.mean(embeddings_2d, axis=0, keepdims=True),
                           (batch, EMBEDDING_DIM))
    assert jnp.allclose(out, ref, atol=1e-5), "mismatch vs reference"

    # Also sanity-check a bf16 embedding input (cast is fused inside the reduce).
    out_bf16_in = tabpfn_feature_extractor_forward(
        lab_values, embeddings_2d.astype(jnp.bfloat16), params)
    out_bf16_in = jax.block_until_ready(out_bf16_in)
    assert out_bf16_in.shape == (batch, EMBEDDING_DIM)
    assert jnp.allclose(out_bf16_in, ref, atol=1e-2), "bf16-input mismatch vs reference"

    print("KERNEL_OK")
</pallas_src>

<mosaic_0001>
module attributes {stable_mosaic.version = 11 : i64} {
  func.func @_attention_pool_kernel(%arg0: memref<23x192xf32, #tpu.memory_space<vmem>>, %arg1: memref<1x192xf32, #tpu.memory_space<vmem>>) attributes {dimension_semantics = [], scalar_prefetch = 0 : i64, scratch_operands = 0 : i64, tpu.core_type = #tpu.core_type<tc>} {
    %c0 = arith.constant 0 : index
    %c0_0 = arith.constant 0 : index
    %0 = vector.load %arg0[%c0, %c0_0] : memref<23x192xf32, #tpu.memory_space<vmem>>, vector<23x192xf32>
    %cst = arith.constant dense<0.000000e+00> : vector<192xf32>
    %1 = vector.multi_reduction <add>, %0, %cst [0] : vector<23x192xf32> to vector<192xf32>
    %2 = vector.shape_cast %1 : vector<192xf32> to vector<1x192xf32>
    %cst_1 = arith.constant 0.0434782617 : f32
    %3 = vector.broadcast %cst_1 : f32 to vector<1x192xf32>
    %4 = arith.mulf %2, %3 : vector<1x192xf32>
    %c0_2 = arith.constant 0 : index
    %c0_3 = arith.constant 0 : index
    %5 = vector.load %arg1[%c0_2, %c0_3] : memref<1x192xf32, #tpu.memory_space<vmem>>, vector<1x192xf32>
    tpu.vector_store %arg1[%c0_2, %c0_3], %4 {strides = array<i32>} : memref<1x192xf32, #tpu.memory_space<vmem>>, vector<1x192xf32>,
    return
  }
}

</mosaic_0001>

<llo_original>
// kernel: tpu_custom_call.1
$region0: #{tpu_custom_call.1}
  #allocation0 [shape = 'u32[]', space=smem, size = 0x4, offset = 0x4, fixed_abs, tag = 'smem constant byte address 0x4 - core index']
  #allocation1 [shape = 'u32[144,128]{1,0:T(1,128)}', space=vmem, size = 0x12000, scoped, tag = 'internal scratch']
  %s0 = inlined_call_operand.hbm [shape: f32[23,192], index: 0, kind: input, shape index: {}]
  %s1 = inlined_call_operand.hbm [shape: f32[1,192], index: 1, kind: output, shape index: {}]
  %s2 = sld [smem:[#allocation0]]
  $region18: #{tpu_custom_call.1} parent=0
    _
  %s4 = ssub.s32 1, %s2
  %s5 = scalar_select 0, %s4, %s2
  $region1: #{tpu_custom_call.1} parent=0
    #allocation2 [shape = 'u8[24576]{0}', space=vmem, size = 0x6000, scoped, tag = 'input window, operand 0, single buffered']
    #allocation3 [shape = 's32[1]{0}', space=sflag, size = 0x4, scoped, tag = 'scoped memory for tpu_custom_call.1']
    #allocation4 [shape = 's32[1]{0}', space=sflag, size = 0x4, scoped, tag = 'scoped memory for tpu_custom_call.1']
    #allocation5 [shape = 'u8[1024]{0}', space=vmem, size = 0x400, scoped, tag = 'output window, operand 0, single buffered']
    %6 = vsyncpa [#allocation3], 0
    %7 = vsyncpa [#allocation4], 0
    // Predicated region
    $region2: #{tpu_custom_call.1} parent=1 // pred_check
      _
    $region3: #{tpu_custom_call.1} parent=1 // pred_check_branch
      %9 = sbr.rel (0) target = $region5
    $region4: #{tpu_custom_call.1} parent=1 // pred_region
      %s11 = ssub.s32 768, 768
      %12 = vsyncadd [#allocation3], %s11
      %s13 = sshll.u32 [#allocation2], 4
      %s14 = int_to_ptr.vmem [resolvable:$true] %s13
      %19 = dma.hbm_to_vmem [thread:$0]  %s0, 768, %s14, [#allocation3], 256, 256, 16
    $region5: #{tpu_custom_call.1} parent=1 // pred_fallthru
      _
    // Predicated region
    $region6: #{tpu_custom_call.1} parent=1 // pred_check
      _
    $region7: #{tpu_custom_call.1} parent=1 // pred_check_branch
      %21 = sbr.rel (0) target = $region9
    $region8: #{tpu_custom_call.1} parent=1 // pred_region
      %22 = dma.done [#allocation3], 768
    $region9: #{tpu_custom_call.1} parent=1 // pred_fallthru
      _
    %v23 = vld [vmem:[#allocation2] sm:$0xff]
    %v24 = vld [vmem:[#allocation2 + $0x8] sm:$0xff]
    %v25 = vld [vmem:[#allocation2 + $0x10] sm:$0xff]
    %v26 = vld [vmem:[#allocation2 + $0x18] sm:$0xff]
    %v27 = vld [vmem:[#allocation2 + $0x20] sm:$0x7f]
    %v28 = vld [vmem:[#allocation2 + $0x28] sm:$0x7f]
    %v29 = vadd.f32 %v23, %v25
    %vm30 = vcmask 1046528
    %v31 = vsel %vm30, %v27, 0.0
    %v32 = vadd.f32 %v29, %v31
    %v33 = vrot.slane %v32, 4
    %v34 = vadd.f32 %v32, %v33
    %v35 = vrot.slane %v34, 2
    %v36 = vadd.f32 %v34, %v35
    %v37 = vrot.slane %v36, 1
    %v38 = vadd.f32 %v36, %v37
    %vm39 = vcmask 523264
    %v40 = vsel %vm39, %v24, 0.0
    %v41 = vsel %vm39, %v26, 0.0
    %v42 = vadd.f32 %v40, %v41
    %vm43 = vcmask 522240
    %v44 = vsel %vm43, %v28, 0.0
    %v45 = vadd.f32 %v42, %v44
    %v46 = vrot.slane %v45, 4
    %v47 = vadd.f32 %v45, %v46
    %v48 = vrot.slane %v47, 2
    %v49 = vadd.f32 %v47, %v48
    %v50 = vrot.slane %v49, 1
    %v51 = vadd.f32 %v49, %v50
    %v52 = vmul.f32 %v38, 0.04347826
    %v53 = vmul.f32 %v51, 0.04347826
    %v56 = vcombine.low %v52, %v53
    %v58 = vunpack.c.l.s4 1966171168
    %v59 = vunpack.c.0.s8 %v58
    %v60 = vlaneseq
    %v61 = vshrl.u32 %v60, 7
    %v62 = vsub.s32 %v59, %v61
    %v63 = vrot.slane %v56, %v62
    %v65 = vunpack.c.l.s4 1966171168
    %v66 = vunpack.c.0.s8 %v65
    %v67 = vlaneseq
    %v68 = vshrl.u32 %v67, 7
    %v69 = vsub.s32 %v66, %v68
    %v70 = vrot.slane %v63, %v69
    %v72 = vlaneseq
    %vm73 = vcmp.ge.s32.totalorder %v72, 0
    %vm74 = vcmp.lt.s32.totalorder %v72, 192
    %vm75 = vmand %vm73, %vm74
    %76 = vst.msk [vmem:[#allocation5] sm:$0x3] %vm75, %v70
    // Predicated region
    $region10: #{tpu_custom_call.1} parent=1 // pred_check
      _
    $region11: #{tpu_custom_call.1} parent=1 // pred_check_branch
      %78 = sbr.rel (0) target = $region13
    $region12: #{tpu_custom_call.1} parent=1 // pred_region
      %s80 = ssub.s32 32, 32
      %81 = vsyncadd [#allocation4], %s80
      %s83 = sshll.u32 [#allocation5], 4
      %s84 = int_to_ptr.vmem [resolvable:$true] %s83
      %86 = dma.vmem_to_hbm [thread:$0]  %s84, 32, %s1, [#allocation4]
    $region13: #{tpu_custom_call.1} parent=1 // pred_fallthru
      _
    // Predicated region
    $region14: #{tpu_custom_call.1} parent=1 // pred_check
      _
    $region15: #{tpu_custom_call.1} parent=1 // pred_check_branch
      %88 = sbr.rel (0) target = $region17
    $region16: #{tpu_custom_call.1} parent=1 // pred_region
      %89 = dma.done [#allocation4], 32
    $region17: #{tpu_custom_call.1} parent=1 // pred_fallthru
      _
    %90 = vsyncpa [#allocation3], 1
    %91 = vsyncpa [#allocation4], 1

</llo_original>
